<compile_context>
chip_gen: v7x
topology: tpu7x:2x2x1
jax: 0.10.0
libtpu: 0.0.40
codegen_flags: <defaults>
</compile_context>

<pallas_src>
import jax
import jax.numpy as jnp
from jax.experimental import pallas as pl
from jax.experimental.pallas import tpu as pltpu


def _relu_kernel(x_ref, o_ref):
    # One elementwise max per vreg on the VPU; 0.0 is weakly typed so the
    # input dtype (f32 here, bf16 if the caller runs in bf16) is preserved.
    o_ref[...] = jnp.maximum(x_ref[...], 0.0)


def _relu_call(x):
    """ReLU over the tensor in its natural layout (no relayout copies)."""
    return pl.pallas_call(
        _relu_kernel,
        out_shape=jax.ShapeDtypeStruct(x.shape, x.dtype),
        # Full-array (un-gridded) VMEM blocks: one DMA in, one DMA out.
        in_specs=[pl.BlockSpec(memory_space=pltpu.MemorySpace.VMEM)],
        out_specs=pl.BlockSpec(memory_space=pltpu.MemorySpace.VMEM),
        # Alias output onto the input buffer -> true in-place once the caller
        # donates the argument (see jit below), matching ReLU(inplace=True).
        input_output_aliases={0: 0},
    )(x)


# Donate the argument so the input/output alias actually saves the HBM
# allocation + write path instead of forcing a defensive copy.
relu_pallas = jax.jit(_relu_call, donate_argnums=0)


if __name__ == "__main__":
    key = jax.random.PRNGKey(0)
    # Shape implied by the module: (1, 128, 7, 7), float32.
    x = jax.random.normal(key, (1, 128, 7, 7), dtype=jnp.float32)

    # Reference computed (and materialized) before the donating kernel call.
    ref = jnp.maximum(x, 0.0)
    jax.block_until_ready(ref)

    shape, dtype = x.shape, x.dtype  # capture before x's buffer is donated

    y = relu_pallas(x)  # x is donated here; do not touch x's data afterwards
    jax.block_until_ready(y)

    assert y.shape == shape and y.dtype == dtype
    assert bool(jnp.allclose(y, ref))

    print("KERNEL_OK")
</pallas_src>

<mosaic_0001>
module attributes {stable_mosaic.version = 11 : i64} {
  func.func @_relu_kernel(%arg0: memref<1x128x7x7xf32, #tpu.memory_space<vmem>>, %arg1: memref<1x128x7x7xf32, #tpu.memory_space<vmem>>) attributes {dimension_semantics = [], scalar_prefetch = 0 : i64, scratch_operands = 0 : i64, tpu.core_type = #tpu.core_type<tc>} {
    %c0 = arith.constant 0 : index
    %c0_0 = arith.constant 0 : index
    %c0_1 = arith.constant 0 : index
    %c0_2 = arith.constant 0 : index
    %0 = vector.load %arg0[%c0, %c0_0, %c0_1, %c0_2] : memref<1x128x7x7xf32, #tpu.memory_space<vmem>>, vector<1x128x7x7xf32>
    %cst = arith.constant 0.000000e+00 : f32
    %1 = vector.broadcast %cst : f32 to vector<1x128x7x7xf32>
    %2 = arith.maximumf %0, %1 : vector<1x128x7x7xf32>
    %c0_3 = arith.constant 0 : index
    %c0_4 = arith.constant 0 : index
    %c0_5 = arith.constant 0 : index
    %c0_6 = arith.constant 0 : index
    %3 = vector.load %arg1[%c0_3, %c0_4, %c0_5, %c0_6] : memref<1x128x7x7xf32, #tpu.memory_space<vmem>>, vector<1x128x7x7xf32>
    tpu.vector_store %arg1[%c0_3, %c0_4, %c0_5, %c0_6], %2 {strides = array<i32>} : memref<1x128x7x7xf32, #tpu.memory_space<vmem>>, vector<1x128x7x7xf32>,
    return
  }
}

</mosaic_0001>

<llo_original>
// kernel: _relu_call.1
$region0: #{_relu_call.1}
  #allocation0 [shape = 'u32[]', space=smem, size = 0x4, offset = 0x4, fixed_abs, tag = 'smem constant byte address 0x4 - core index']
  #allocation1 [shape = 'u32[144,128]{1,0:T(1,128)}', space=vmem, size = 0x12000, scoped, tag = 'internal scratch']
  %s0 = inlined_call_operand.vmem [shape: f32[1,128,7,7], index: 0, kind: input, shape index: {}, may-alias: {0,1}]
  %s1 = inlined_call_operand.vmem [shape: f32[1,128,7,7], index: 1, kind: output, shape index: {}, may-alias: {0,1}]
  %s2 = sld [smem:[#allocation0]]
  $region14: #{_relu_call.1} parent=0
    _
  %s4 = ssub.s32 1, %s2
  %s5 = scalar_select 0, %s4, %s2
  // Predicated region
  $region2: #{_relu_call.1} parent=0 // pred_check
    _
  $region3: #{_relu_call.1} parent=0 // pred_check_branch
    %7 = sbr.rel (0) target = $region5
  $region4: #{_relu_call.1} parent=0 // pred_region
    _
  $region5: #{_relu_call.1} parent=0 // pred_fallthru
    _
  %v8 = vld [vmem:[%s0] sm:$0x7f]
  %v9 = vld [vmem:[%s0 + $0x8] sm:$0x7f]
  %v10 = vld [vmem:[%s0 + $0x10] sm:$0x7f]
  %v11 = vld [vmem:[%s0 + $0x18] sm:$0x7f]
  %v12 = vld [vmem:[%s0 + $0x20] sm:$0x7f]
  %v13 = vld [vmem:[%s0 + $0x28] sm:$0x7f]
  %v14 = vld [vmem:[%s0 + $0x30] sm:$0x7f]
  %v15 = vld [vmem:[%s0 + $0x38] sm:$0x7f]
  %v16 = vld [vmem:[%s0 + $0x40] sm:$0x7f]
  %v17 = vld [vmem:[%s0 + $0x48] sm:$0x7f]
  %v18 = vld [vmem:[%s0 + $0x50] sm:$0x7f]
  %v19 = vld [vmem:[%s0 + $0x58] sm:$0x7f]
  %v20 = vld [vmem:[%s0 + $0x60] sm:$0x7f]
  %v21 = vld [vmem:[%s0 + $0x68] sm:$0x7f]
  %v22 = vld [vmem:[%s0 + $0x70] sm:$0x7f]
  %v23 = vld [vmem:[%s0 + $0x78] sm:$0x7f]
  %v24 = vld [vmem:[%s0 + $0x80] sm:$0x7f]
  %v25 = vld [vmem:[%s0 + $0x88] sm:$0x7f]
  %v26 = vld [vmem:[%s0 + $0x90] sm:$0x7f]
  %v27 = vld [vmem:[%s0 + $0x98] sm:$0x7f]
  %v28 = vld [vmem:[%s0 + $0xa0] sm:$0x7f]
  %v29 = vld [vmem:[%s0 + $0xa8] sm:$0x7f]
  %v30 = vld [vmem:[%s0 + $0xb0] sm:$0x7f]
  %v31 = vld [vmem:[%s0 + $0xb8] sm:$0x7f]
  %v32 = vld [vmem:[%s0 + $0xc0] sm:$0x7f]
  %v33 = vld [vmem:[%s0 + $0xc8] sm:$0x7f]
  %v34 = vld [vmem:[%s0 + $0xd0] sm:$0x7f]
  %v35 = vld [vmem:[%s0 + $0xd8] sm:$0x7f]
  %v36 = vld [vmem:[%s0 + $0xe0] sm:$0x7f]
  %v37 = vld [vmem:[%s0 + $0xe8] sm:$0x7f]
  %v38 = vld [vmem:[%s0 + $0xf0] sm:$0x7f]
  %v39 = vld [vmem:[%s0 + $0xf8] sm:$0x7f]
  %v40 = vld [vmem:[%s0 + $0x100] sm:$0x7f]
  %v41 = vld [vmem:[%s0 + $0x108] sm:$0x7f]
  %v42 = vld [vmem:[%s0 + $0x110] sm:$0x7f]
  %v43 = vld [vmem:[%s0 + $0x118] sm:$0x7f]
  %v44 = vld [vmem:[%s0 + $0x120] sm:$0x7f]
  %v45 = vld [vmem:[%s0 + $0x128] sm:$0x7f]
  %v46 = vld [vmem:[%s0 + $0x130] sm:$0x7f]
  %v47 = vld [vmem:[%s0 + $0x138] sm:$0x7f]
  %v48 = vld [vmem:[%s0 + $0x140] sm:$0x7f]
  %v49 = vld [vmem:[%s0 + $0x148] sm:$0x7f]
  %v50 = vld [vmem:[%s0 + $0x150] sm:$0x7f]
  %v51 = vld [vmem:[%s0 + $0x158] sm:$0x7f]
  %v52 = vld [vmem:[%s0 + $0x160] sm:$0x7f]
  %v53 = vld [vmem:[%s0 + $0x168] sm:$0x7f]
  %v54 = vld [vmem:[%s0 + $0x170] sm:$0x7f]
  %v55 = vld [vmem:[%s0 + $0x178] sm:$0x7f]
  %v56 = vld [vmem:[%s0 + $0x180] sm:$0x7f]
  %v57 = vld [vmem:[%s0 + $0x188] sm:$0x7f]
  %v58 = vld [vmem:[%s0 + $0x190] sm:$0x7f]
  %v59 = vld [vmem:[%s0 + $0x198] sm:$0x7f]
  %v60 = vld [vmem:[%s0 + $0x1a0] sm:$0x7f]
  %v61 = vld [vmem:[%s0 + $0x1a8] sm:$0x7f]
  %v62 = vld [vmem:[%s0 + $0x1b0] sm:$0x7f]
  %v63 = vld [vmem:[%s0 + $0x1b8] sm:$0x7f]
  %v64 = vld [vmem:[%s0 + $0x1c0] sm:$0x7f]
  %v65 = vld [vmem:[%s0 + $0x1c8] sm:$0x7f]
  %v66 = vld [vmem:[%s0 + $0x1d0] sm:$0x7f]
  %v67 = vld [vmem:[%s0 + $0x1d8] sm:$0x7f]
  %v68 = vld [vmem:[%s0 + $0x1e0] sm:$0x7f]
  %v69 = vld [vmem:[%s0 + $0x1e8] sm:$0x7f]
  %v70 = vld [vmem:[%s0 + $0x1f0] sm:$0x7f]
  %v71 = vld [vmem:[%s0 + $0x1f8] sm:$0x7f]
  %v72 = vld [vmem:[%s0 + $0x200] sm:$0x7f]
  %v73 = vld [vmem:[%s0 + $0x208] sm:$0x7f]
  %v74 = vld [vmem:[%s0 + $0x210] sm:$0x7f]
  %v75 = vld [vmem:[%s0 + $0x218] sm:$0x7f]
  %v76 = vld [vmem:[%s0 + $0x220] sm:$0x7f]
  %v77 = vld [vmem:[%s0 + $0x228] sm:$0x7f]
  %v78 = vld [vmem:[%s0 + $0x230] sm:$0x7f]
  %v79 = vld [vmem:[%s0 + $0x238] sm:$0x7f]
  %v80 = vld [vmem:[%s0 + $0x240] sm:$0x7f]
  %v81 = vld [vmem:[%s0 + $0x248] sm:$0x7f]
  %v82 = vld [vmem:[%s0 + $0x250] sm:$0x7f]
  %v83 = vld [vmem:[%s0 + $0x258] sm:$0x7f]
  %v84 = vld [vmem:[%s0 + $0x260] sm:$0x7f]
  %v85 = vld [vmem:[%s0 + $0x268] sm:$0x7f]
  %v86 = vld [vmem:[%s0 + $0x270] sm:$0x7f]
  %v87 = vld [vmem:[%s0 + $0x278] sm:$0x7f]
  %v88 = vld [vmem:[%s0 + $0x280] sm:$0x7f]
  %v89 = vld [vmem:[%s0 + $0x288] sm:$0x7f]
  %v90 = vld [vmem:[%s0 + $0x290] sm:$0x7f]
  %v91 = vld [vmem:[%s0 + $0x298] sm:$0x7f]
  %v92 = vld [vmem:[%s0 + $0x2a0] sm:$0x7f]
  %v93 = vld [vmem:[%s0 + $0x2a8] sm:$0x7f]
  %v94 = vld [vmem:[%s0 + $0x2b0] sm:$0x7f]
  %v95 = vld [vmem:[%s0 + $0x2b8] sm:$0x7f]
  %v96 = vld [vmem:[%s0 + $0x2c0] sm:$0x7f]
  %v97 = vld [vmem:[%s0 + $0x2c8] sm:$0x7f]
  %v98 = vld [vmem:[%s0 + $0x2d0] sm:$0x7f]
  %v99 = vld [vmem:[%s0 + $0x2d8] sm:$0x7f]
  %v100 = vld [vmem:[%s0 + $0x2e0] sm:$0x7f]
  %v101 = vld [vmem:[%s0 + $0x2e8] sm:$0x7f]
  %v102 = vld [vmem:[%s0 + $0x2f0] sm:$0x7f]
  %v103 = vld [vmem:[%s0 + $0x2f8] sm:$0x7f]
  %v104 = vld [vmem:[%s0 + $0x300] sm:$0x7f]
  %v105 = vld [vmem:[%s0 + $0x308] sm:$0x7f]
  %v106 = vld [vmem:[%s0 + $0x310] sm:$0x7f]
  %v107 = vld [vmem:[%s0 + $0x318] sm:$0x7f]
  %v108 = vld [vmem:[%s0 + $0x320] sm:$0x7f]
  %v109 = vld [vmem:[%s0 + $0x328] sm:$0x7f]
  %v110 = vld [vmem:[%s0 + $0x330] sm:$0x7f]
  %v111 = vld [vmem:[%s0 + $0x338] sm:$0x7f]
  %v112 = vld [vmem:[%s0 + $0x340] sm:$0x7f]
  %v113 = vld [vmem:[%s0 + $0x348] sm:$0x7f]
  %v114 = vld [vmem:[%s0 + $0x350] sm:$0x7f]
  %v115 = vld [vmem:[%s0 + $0x358] sm:$0x7f]
  %v116 = vld [vmem:[%s0 + $0x360] sm:$0x7f]
  %v117 = vld [vmem:[%s0 + $0x368] sm:$0x7f]
  %v118 = vld [vmem:[%s0 + $0x370] sm:$0x7f]
  %v119 = vld [vmem:[%s0 + $0x378] sm:$0x7f]
  %v120 = vld [vmem:[%s0 + $0x380] sm:$0x7f]
  %v121 = vld [vmem:[%s0 + $0x388] sm:$0x7f]
  %v122 = vld [vmem:[%s0 + $0x390] sm:$0x7f]
  %v123 = vld [vmem:[%s0 + $0x398] sm:$0x7f]
  %v124 = vld [vmem:[%s0 + $0x3a0] sm:$0x7f]
  %v125 = vld [vmem:[%s0 + $0x3a8] sm:$0x7f]
  %v126 = vld [vmem:[%s0 + $0x3b0] sm:$0x7f]
  %v127 = vld [vmem:[%s0 + $0x3b8] sm:$0x7f]
  %v128 = vld [vmem:[%s0 + $0x3c0] sm:$0x7f]
  %v129 = vld [vmem:[%s0 + $0x3c8] sm:$0x7f]
  %v130 = vld [vmem:[%s0 + $0x3d0] sm:$0x7f]
  %v131 = vld [vmem:[%s0 + $0x3d8] sm:$0x7f]
  %v132 = vld [vmem:[%s0 + $0x3e0] sm:$0x7f]
  %v133 = vld [vmem:[%s0 + $0x3e8] sm:$0x7f]
  %v134 = vld [vmem:[%s0 + $0x3f0] sm:$0x7f]
  %v135 = vld [vmem:[%s0 + $0x3f8] sm:$0x7f]
  %v136 = vmax.f32 %v8, 0.0
  %v137 = vmax.f32 %v9, 0.0
  %v138 = vmax.f32 %v10, 0.0
  %v139 = vmax.f32 %v11, 0.0
  %v140 = vmax.f32 %v12, 0.0
  %v141 = vmax.f32 %v13, 0.0
  %v142 = vmax.f32 %v14, 0.0
  %v143 = vmax.f32 %v15, 0.0
  %v144 = vmax.f32 %v16, 0.0
  %v145 = vmax.f32 %v17, 0.0
  %v146 = vmax.f32 %v18, 0.0
  %v147 = vmax.f32 %v19, 0.0
  %v148 = vmax.f32 %v20, 0.0
  %v149 = vmax.f32 %v21, 0.0
  %v150 = vmax.f32 %v22, 0.0
  %v151 = vmax.f32 %v23, 0.0
  %v152 = vmax.f32 %v24, 0.0
  %v153 = vmax.f32 %v25, 0.0
  %v154 = vmax.f32 %v26, 0.0
  %v155 = vmax.f32 %v27, 0.0
  %v156 = vmax.f32 %v28, 0.0
  %v157 = vmax.f32 %v29, 0.0
  %v158 = vmax.f32 %v30, 0.0
  %v159 = vmax.f32 %v31, 0.0
  %v160 = vmax.f32 %v32, 0.0
  %v161 = vmax.f32 %v33, 0.0
  %v162 = vmax.f32 %v34, 0.0
  %v163 = vmax.f32 %v35, 0.0
  %v164 = vmax.f32 %v36, 0.0
  %v165 = vmax.f32 %v37, 0.0
  %v166 = vmax.f32 %v38, 0.0
  %v167 = vmax.f32 %v39, 0.0
  %v168 = vmax.f32 %v40, 0.0
  %v169 = vmax.f32 %v41, 0.0
  %v170 = vmax.f32 %v42, 0.0
  %v171 = vmax.f32 %v43, 0.0
  %v172 = vmax.f32 %v44, 0.0
  %v173 = vmax.f32 %v45, 0.0
  %v174 = vmax.f32 %v46, 0.0
  %v175 = vmax.f32 %v47, 0.0
  %v176 = vmax.f32 %v48, 0.0
  %v177 = vmax.f32 %v49, 0.0
  %v178 = vmax.f32 %v50, 0.0
  %v179 = vmax.f32 %v51, 0.0
  %v180 = vmax.f32 %v52, 0.0
  %v181 = vmax.f32 %v53, 0.0
  %v182 = vmax.f32 %v54, 0.0
  %v183 = vmax.f32 %v55, 0.0
  %v184 = vmax.f32 %v56, 0.0
  %v185 = vmax.f32 %v57, 0.0
  %v186 = vmax.f32 %v58, 0.0
  %v187 = vmax.f32 %v59, 0.0
  %v188 = vmax.f32 %v60, 0.0
  %v189 = vmax.f32 %v61, 0.0
  %v190 = vmax.f32 %v62, 0.0
  %v191 = vmax.f32 %v63, 0.0
  %v192 = vmax.f32 %v64, 0.0
  %v193 = vmax.f32 %v65, 0.0
  %v194 = vmax.f32 %v66, 0.0
  %v195 = vmax.f32 %v67, 0.0
  %v196 = vmax.f32 %v68, 0.0
  %v197 = vmax.f32 %v69, 0.0
  %v198 = vmax.f32 %v70, 0.0
  %v199 = vmax.f32 %v71, 0.0
  %v200 = vmax.f32 %v72, 0.0
  %v201 = vmax.f32 %v73, 0.0
  %v202 = vmax.f32 %v74, 0.0
  %v203 = vmax.f32 %v75, 0.0
  %v204 = vmax.f32 %v76, 0.0
  %v205 = vmax.f32 %v77, 0.0
  %v206 = vmax.f32 %v78, 0.0
  %v207 = vmax.f32 %v79, 0.0
  %v208 = vmax.f32 %v80, 0.0
  %v209 = vmax.f32 %v81, 0.0
  %v210 = vmax.f32 %v82, 0.0
  %v211 = vmax.f32 %v83, 0.0
  %v212 = vmax.f32 %v84, 0.0
  %v213 = vmax.f32 %v85, 0.0
  %v214 = vmax.f32 %v86, 0.0
  %v215 = vmax.f32 %v87, 0.0
  %v216 = vmax.f32 %v88, 0.0
  %v217 = vmax.f32 %v89, 0.0
  %v218 = vmax.f32 %v90, 0.0
  %v219 = vmax.f32 %v91, 0.0
  %v220 = vmax.f32 %v92, 0.0
  %v221 = vmax.f32 %v93, 0.0
  %v222 = vmax.f32 %v94, 0.0
  %v223 = vmax.f32 %v95, 0.0
  %v224 = vmax.f32 %v96, 0.0
  %v225 = vmax.f32 %v97, 0.0
  %v226 = vmax.f32 %v98, 0.0
  %v227 = vmax.f32 %v99, 0.0
  %v228 = vmax.f32 %v100, 0.0
  %v229 = vmax.f32 %v101, 0.0
  %v230 = vmax.f32 %v102, 0.0
  %v231 = vmax.f32 %v103, 0.0
  %v232 = vmax.f32 %v104, 0.0
  %v233 = vmax.f32 %v105, 0.0
  %v234 = vmax.f32 %v106, 0.0
  %v235 = vmax.f32 %v107, 0.0
  %v236 = vmax.f32 %v108, 0.0
  %v237 = vmax.f32 %v109, 0.0
  %v238 = vmax.f32 %v110, 0.0
  %v239 = vmax.f32 %v111, 0.0
  %v240 = vmax.f32 %v112, 0.0
  %v241 = vmax.f32 %v113, 0.0
  %v242 = vmax.f32 %v114, 0.0
  %v243 = vmax.f32 %v115, 0.0
  %v244 = vmax.f32 %v116, 0.0
  %v245 = vmax.f32 %v117, 0.0
  %v246 = vmax.f32 %v118, 0.0
  %v247 = vmax.f32 %v119, 0.0
  %v248 = vmax.f32 %v120, 0.0
  %v249 = vmax.f32 %v121, 0.0
  %v250 = vmax.f32 %v122, 0.0
  %v251 = vmax.f32 %v123, 0.0
  %v252 = vmax.f32 %v124, 0.0
  %v253 = vmax.f32 %v125, 0.0
  %v254 = vmax.f32 %v126, 0.0
  %v255 = vmax.f32 %v127, 0.0
  %v256 = vmax.f32 %v128, 0.0
  %v257 = vmax.f32 %v129, 0.0
  %v258 = vmax.f32 %v130, 0.0
  %v259 = vmax.f32 %v131, 0.0
  %v260 = vmax.f32 %v132, 0.0
  %v261 = vmax.f32 %v133, 0.0
  %v262 = vmax.f32 %v134, 0.0
  %v263 = vmax.f32 %v135, 0.0
  %vm264 = vcmask 55296
  %265 = vst.msk [vmem:[%s1] sm:$0x7f] %vm264, %v136
  %266 = vst.msk [vmem:[%s1 + $0x8] sm:$0x7f] %vm264, %v137
  %267 = vst.msk [vmem:[%s1 + $0x10] sm:$0x7f] %vm264, %v138
  %268 = vst.msk [vmem:[%s1 + $0x18] sm:$0x7f] %vm264, %v139
  %269 = vst.msk [vmem:[%s1 + $0x20] sm:$0x7f] %vm264, %v140
  %270 = vst.msk [vmem:[%s1 + $0x28] sm:$0x7f] %vm264, %v141
  %271 = vst.msk [vmem:[%s1 + $0x30] sm:$0x7f] %vm264, %v142
  %272 = vst.msk [vmem:[%s1 + $0x38] sm:$0x7f] %vm264, %v143
  %273 = vst.msk [vmem:[%s1 + $0x40] sm:$0x7f] %vm264, %v144
  %274 = vst.msk [vmem:[%s1 + $0x48] sm:$0x7f] %vm264, %v145
  %275 = vst.msk [vmem:[%s1 + $0x50] sm:$0x7f] %vm264, %v146
  %276 = vst.msk [vmem:[%s1 + $0x58] sm:$0x7f] %vm264, %v147
  %277 = vst.msk [vmem:[%s1 + $0x60] sm:$0x7f] %vm264, %v148
  %278 = vst.msk [vmem:[%s1 + $0x68] sm:$0x7f] %vm264, %v149
  %279 = vst.msk [vmem:[%s1 + $0x70] sm:$0x7f] %vm264, %v150
  %280 = vst.msk [vmem:[%s1 + $0x78] sm:$0x7f] %vm264, %v151
  %281 = vst.msk [vmem:[%s1 + $0x80] sm:$0x7f] %vm264, %v152
  %282 = vst.msk [vmem:[%s1 + $0x88] sm:$0x7f] %vm264, %v153
  %283 = vst.msk [vmem:[%s1 + $0x90] sm:$0x7f] %vm264, %v154
  %284 = vst.msk [vmem:[%s1 + $0x98] sm:$0x7f] %vm264, %v155
  %285 = vst.msk [vmem:[%s1 + $0xa0] sm:$0x7f] %vm264, %v156
  %286 = vst.msk [vmem:[%s1 + $0xa8] sm:$0x7f] %vm264, %v157
  %287 = vst.msk [vmem:[%s1 + $0xb0] sm:$0x7f] %vm264, %v158
  %288 = vst.msk [vmem:[%s1 + $0xb8] sm:$0x7f] %vm264, %v159
  %289 = vst.msk [vmem:[%s1 + $0xc0] sm:$0x7f] %vm264, %v160
  %290 = vst.msk [vmem:[%s1 + $0xc8] sm:$0x7f] %vm264, %v161
  %291 = vst.msk [vmem:[%s1 + $0xd0] sm:$0x7f] %vm264, %v162
  %292 = vst.msk [vmem:[%s1 + $0xd8] sm:$0x7f] %vm264, %v163
  %293 = vst.msk [vmem:[%s1 + $0xe0] sm:$0x7f] %vm264, %v164
  %294 = vst.msk [vmem:[%s1 + $0xe8] sm:$0x7f] %vm264, %v165
  %295 = vst.msk [vmem:[%s1 + $0xf0] sm:$0x7f] %vm264, %v166
  %296 = vst.msk [vmem:[%s1 + $0xf8] sm:$0x7f] %vm264, %v167
  %297 = vst.msk [vmem:[%s1 + $0x100] sm:$0x7f] %vm264, %v168
  %298 = vst.msk [vmem:[%s1 + $0x108] sm:$0x7f] %vm264, %v169
  %299 = vst.msk [vmem:[%s1 + $0x110] sm:$0x7f] %vm264, %v170
  %300 = vst.msk [vmem:[%s1 + $0x118] sm:$0x7f] %vm264, %v171
  %301 = vst.msk [vmem:[%s1 + $0x120] sm:$0x7f] %vm264, %v172
  %302 = vst.msk [vmem:[%s1 + $0x128] sm:$0x7f] %vm264, %v173
  %303 = vst.msk [vmem:[%s1 + $0x130] sm:$0x7f] %vm264, %v174
  %304 = vst.msk [vmem:[%s1 + $0x138] sm:$0x7f] %vm264, %v175
  %305 = vst.msk [vmem:[%s1 + $0x140] sm:$0x7f] %vm264, %v176
  %306 = vst.msk [vmem:[%s1 + $0x148] sm:$0x7f] %vm264, %v177
  %307 = vst.msk [vmem:[%s1 + $0x150] sm:$0x7f] %vm264, %v178
  %308 = vst.msk [vmem:[%s1 + $0x158] sm:$0x7f] %vm264, %v179
  %309 = vst.msk [vmem:[%s1 + $0x160] sm:$0x7f] %vm264, %v180
  %310 = vst.msk [vmem:[%s1 + $0x168] sm:$0x7f] %vm264, %v181
  %311 = vst.msk [vmem:[%s1 + $0x170] sm:$0x7f] %vm264, %v182
  %312 = vst.msk [vmem:[%s1 + $0x178] sm:$0x7f] %vm264, %v183
  %313 = vst.msk [vmem:[%s1 + $0x180] sm:$0x7f] %vm264, %v184
  %314 = vst.msk [vmem:[%s1 + $0x188] sm:$0x7f] %vm264, %v185
  %315 = vst.msk [vmem:[%s1 + $0x190] sm:$0x7f] %vm264, %v186
  %316 = vst.msk [vmem:[%s1 + $0x198] sm:$0x7f] %vm264, %v187
  %317 = vst.msk [vmem:[%s1 + $0x1a0] sm:$0x7f] %vm264, %v188
  %318 = vst.msk [vmem:[%s1 + $0x1a8] sm:$0x7f] %vm264, %v189
  %319 = vst.msk [vmem:[%s1 + $0x1b0] sm:$0x7f] %vm264, %v190
  %320 = vst.msk [vmem:[%s1 + $0x1b8] sm:$0x7f] %vm264, %v191
  %321 = vst.msk [vmem:[%s1 + $0x1c0] sm:$0x7f] %vm264, %v192
  %322 = vst.msk [vmem:[%s1 + $0x1c8] sm:$0x7f] %vm264, %v193
  %323 = vst.msk [vmem:[%s1 + $0x1d0] sm:$0x7f] %vm264, %v194
  %324 = vst.msk [vmem:[%s1 + $0x1d8] sm:$0x7f] %vm264, %v195
  %325 = vst.msk [vmem:[%s1 + $0x1e0] sm:$0x7f] %vm264, %v196
  %326 = vst.msk [vmem:[%s1 + $0x1e8] sm:$0x7f] %vm264, %v197
  %327 = vst.msk [vmem:[%s1 + $0x1f0] sm:$0x7f] %vm264, %v198
  %328 = vst.msk [vmem:[%s1 + $0x1f8] sm:$0x7f] %vm264, %v199
  %329 = vst.msk [vmem:[%s1 + $0x200] sm:$0x7f] %vm264, %v200
  %330 = vst.msk [vmem:[%s1 + $0x208] sm:$0x7f] %vm264, %v201
  %331 = vst.msk [vmem:[%s1 + $0x210] sm:$0x7f] %vm264, %v202
  %332 = vst.msk [vmem:[%s1 + $0x218] sm:$0x7f] %vm264, %v203
  %333 = vst.msk [vmem:[%s1 + $0x220] sm:$0x7f] %vm264, %v204
  %334 = vst.msk [vmem:[%s1 + $0x228] sm:$0x7f] %vm264, %v205
  %335 = vst.msk [vmem:[%s1 + $0x230] sm:$0x7f] %vm264, %v206
  %336 = vst.msk [vmem:[%s1 + $0x238] sm:$0x7f] %vm264, %v207
  %337 = vst.msk [vmem:[%s1 + $0x240] sm:$0x7f] %vm264, %v208
  %338 = vst.msk [vmem:[%s1 + $0x248] sm:$0x7f] %vm264, %v209
  %339 = vst.msk [vmem:[%s1 + $0x250] sm:$0x7f] %vm264, %v210
  %340 = vst.msk [vmem:[%s1 + $0x258] sm:$0x7f] %vm264, %v211
  %341 = vst.msk [vmem:[%s1 + $0x260] sm:$0x7f] %vm264, %v212
  %342 = vst.msk [vmem:[%s1 + $0x268] sm:$0x7f] %vm264, %v213
  %343 = vst.msk [vmem:[%s1 + $0x270] sm:$0x7f] %vm264, %v214
  %344 = vst.msk [vmem:[%s1 + $0x278] sm:$0x7f] %vm264, %v215
  %345 = vst.msk [vmem:[%s1 + $0x280] sm:$0x7f] %vm264, %v216
  %346 = vst.msk [vmem:[%s1 + $0x288] sm:$0x7f] %vm264, %v217
  %347 = vst.msk [vmem:[%s1 + $0x290] sm:$0x7f] %vm264, %v218
  %348 = vst.msk [vmem:[%s1 + $0x298] sm:$0x7f] %vm264, %v219
  %349 = vst.msk [vmem:[%s1 + $0x2a0] sm:$0x7f] %vm264, %v220
  %350 = vst.msk [vmem:[%s1 + $0x2a8] sm:$0x7f] %vm264, %v221
  %351 = vst.msk [vmem:[%s1 + $0x2b0] sm:$0x7f] %vm264, %v222
  %352 = vst.msk [vmem:[%s1 + $0x2b8] sm:$0x7f] %vm264, %v223
  %353 = vst.msk [vmem:[%s1 + $0x2c0] sm:$0x7f] %vm264, %v224
  %354 = vst.msk [vmem:[%s1 + $0x2c8] sm:$0x7f] %vm264, %v225
  %355 = vst.msk [vmem:[%s1 + $0x2d0] sm:$0x7f] %vm264, %v226
  %356 = vst.msk [vmem:[%s1 + $0x2d8] sm:$0x7f] %vm264, %v227
  %357 = vst.msk [vmem:[%s1 + $0x2e0] sm:$0x7f] %vm264, %v228
  %358 = vst.msk [vmem:[%s1 + $0x2e8] sm:$0x7f] %vm264, %v229
  %359 = vst.msk [vmem:[%s1 + $0x2f0] sm:$0x7f] %vm264, %v230
  %360 = vst.msk [vmem:[%s1 + $0x2f8] sm:$0x7f] %vm264, %v231
  %361 = vst.msk [vmem:[%s1 + $0x300] sm:$0x7f] %vm264, %v232
  %362 = vst.msk [vmem:[%s1 + $0x308] sm:$0x7f] %vm264, %v233
  %363 = vst.msk [vmem:[%s1 + $0x310] sm:$0x7f] %vm264, %v234
  %364 = vst.msk [vmem:[%s1 + $0x318] sm:$0x7f] %vm264, %v235
  %365 = vst.msk [vmem:[%s1 + $0x320] sm:$0x7f] %vm264, %v236
  %366 = vst.msk [vmem:[%s1 + $0x328] sm:$0x7f] %vm264, %v237
  %367 = vst.msk [vmem:[%s1 + $0x330] sm:$0x7f] %vm264, %v238
  %368 = vst.msk [vmem:[%s1 + $0x338] sm:$0x7f] %vm264, %v239
  %369 = vst.msk [vmem:[%s1 + $0x340] sm:$0x7f] %vm264, %v240
  %370 = vst.msk [vmem:[%s1 + $0x348] sm:$0x7f] %vm264, %v241
  %371 = vst.msk [vmem:[%s1 + $0x350] sm:$0x7f] %vm264, %v242
  %372 = vst.msk [vmem:[%s1 + $0x358] sm:$0x7f] %vm264, %v243
  %373 = vst.msk [vmem:[%s1 + $0x360] sm:$0x7f] %vm264, %v244
  %374 = vst.msk [vmem:[%s1 + $0x368] sm:$0x7f] %vm264, %v245
  %375 = vst.msk [vmem:[%s1 + $0x370] sm:$0x7f] %vm264, %v246
  %376 = vst.msk [vmem:[%s1 + $0x378] sm:$0x7f] %vm264, %v247
  %377 = vst.msk [vmem:[%s1 + $0x380] sm:$0x7f] %vm264, %v248
  %378 = vst.msk [vmem:[%s1 + $0x388] sm:$0x7f] %vm264, %v249
  %379 = vst.msk [vmem:[%s1 + $0x390] sm:$0x7f] %vm264, %v250
  %380 = vst.msk [vmem:[%s1 + $0x398] sm:$0x7f] %vm264, %v251
  %381 = vst.msk [vmem:[%s1 + $0x3a0] sm:$0x7f] %vm264, %v252
  %382 = vst.msk [vmem:[%s1 + $0x3a8] sm:$0x7f] %vm264, %v253
  %383 = vst.msk [vmem:[%s1 + $0x3b0] sm:$0x7f] %vm264, %v254
  %384 = vst.msk [vmem:[%s1 + $0x3b8] sm:$0x7f] %vm264, %v255
  %385 = vst.msk [vmem:[%s1 + $0x3c0] sm:$0x7f] %vm264, %v256
  %386 = vst.msk [vmem:[%s1 + $0x3c8] sm:$0x7f] %vm264, %v257
  %387 = vst.msk [vmem:[%s1 + $0x3d0] sm:$0x7f] %vm264, %v258
  %388 = vst.msk [vmem:[%s1 + $0x3d8] sm:$0x7f] %vm264, %v259
  %389 = vst.msk [vmem:[%s1 + $0x3e0] sm:$0x7f] %vm264, %v260
  %390 = vst.msk [vmem:[%s1 + $0x3e8] sm:$0x7f] %vm264, %v261
  %391 = vst.msk [vmem:[%s1 + $0x3f0] sm:$0x7f] %vm264, %v262
  %392 = vst.msk [vmem:[%s1 + $0x3f8] sm:$0x7f] %vm264, %v263
  // Predicated region
  $region6: #{_relu_call.1} parent=0 // pred_check
    _
  $region7: #{_relu_call.1} parent=0 // pred_check_branch
    %394 = sbr.rel (0) target = $region9
  $region8: #{_relu_call.1} parent=0 // pred_region
    _
  $region9: #{_relu_call.1} parent=0 // pred_fallthru
    _
  // Predicated region
  $region10: #{_relu_call.1} parent=0 // pred_check
    _
  $region11: #{_relu_call.1} parent=0 // pred_check_branch
    %396 = sbr.rel (0) target = $region13
  $region12: #{_relu_call.1} parent=0 // pred_region
    _
  $region13: #{_relu_call.1} parent=0 // pred_fallthru
    _

</llo_original>
